<compile_context>
chip_gen: v5e
topology: v5e:2x2
jax: 0.10.0
libtpu: 0.0.40
codegen_flags: <defaults>
</compile_context>

<pallas_src>
import jax
import jax.numpy as jnp
from jax.experimental import pallas as pl
from jax.experimental.pallas import tpu as pltpu


_CHUNK_T = 16  # time-chunk length; re-derived for the 64 MiB/TC v7x VMEM budget


def _round_up(x, m):
    return (x + m - 1) // m * m


# ----------------------------- Pallas kernel -----------------------------

def _bilstm_recurrence_kernel(gx_f_ref, gx_b_ref, whh_f_ref, whh_b_ref,
                              out_f_ref, out_b_ref,
                              h_f, c_f, h_b, c_b):
    """Recurrent part of one bidirectional LSTM layer.

    Grid axis 0 iterates time chunks ("arbitrary"; carries persist in scratch).
    Both directions are processed, interleaved, in every program:

      gx_*_ref : (Tc, B, 4H) bf16  precomputed x_t @ W_ih + (b_ih + b_hh)
                 (backward slab pre-reversed in time -> monotonic scan)
      whh_*_ref: (H, 4H)     bf16  recurrent weights
      out_*_ref: (Tc, B, H)  f32   hidden state per step (backward slab is in
                 reversed-time order; un-mapped in the wrapper)
      h_*/c_*  : (B, H)      f32   VMEM carries (persist across chunks)

    Gate order matches PyTorch: (i, f, g, o).
    """
    Tc = gx_f_ref.shape[0]
    H = out_f_ref.shape[-1]

    @pl.when(pl.program_id(0) == 0)
    def _():
        h_f[...] = jnp.zeros_like(h_f)
        c_f[...] = jnp.zeros_like(c_f)
        h_b[...] = jnp.zeros_like(h_b)
        c_b[...] = jnp.zeros_like(c_b)

    whh_f = whh_f_ref[...]          # bf16, loop-invariant over the chunk
    whh_b = whh_b_ref[...]

    def _gates(gates, c_prev):
        # NOTE: gate slices are lane-aligned when H % 128 == 0 (production
        # sizes); at toy H the compiler inserts correct-but-slow relayouts.
        i_g = jax.nn.sigmoid(gates[:, 0 * H:1 * H])
        f_g = jax.nn.sigmoid(gates[:, 1 * H:2 * H])
        g_g = jnp.tanh(gates[:, 2 * H:3 * H])
        o_g = jax.nn.sigmoid(gates[:, 3 * H:4 * H])
        c_new = f_g * c_prev + i_g * g_g
        h_new = o_g * jnp.tanh(c_new)
        return h_new, c_new

    def _step(s):
        # bf16 MXU operands, f32 accumulation; carries stay f32.
        gf = gx_f_ref[pl.ds(s, 1)][0].astype(jnp.float32) + jnp.dot(
            h_f[...].astype(jnp.bfloat16), whh_f,
            preferred_element_type=jnp.float32)
        gb = gx_b_ref[pl.ds(s, 1)][0].astype(jnp.float32) + jnp.dot(
            h_b[...].astype(jnp.bfloat16), whh_b,
            preferred_element_type=jnp.float32)

        hf_new, cf_new = _gates(gf, c_f[...])
        hb_new, cb_new = _gates(gb, c_b[...])

        h_f[...] = hf_new
        c_f[...] = cf_new
        h_b[...] = hb_new
        c_b[...] = cb_new

        # Stores hit the chunk-sized VMEM output block; HBM writeback happens
        # once per chunk via the pipeline.
        out_f_ref[pl.ds(s, 1)] = hf_new[None].astype(out_f_ref.dtype)
        out_b_ref[pl.ds(s, 1)] = hb_new[None].astype(out_b_ref.dtype)

    if Tc % 2 == 0:
        # Manual 2-step body: cross-step visibility for the LLO scheduler
        # (overlap step t's EUP/VPU tail with step t+1's loads / MXU push).
        @pl.loop(0, Tc // 2)
        def _(i):
            s = pl.multiple_of(i * 2, 2)
            _step(s)
            _step(s + 1)
    else:
        @pl.loop(0, Tc)
        def _(s):
            _step(s)


# ----------------------------- Pallas wrapper -----------------------------

def _bilstm_recurrence(gx_f, gx_b, whh_f, whh_b, hidden_size, chunk):
    """Run the chunked recurrence for one layer.

    gx_f / gx_b: (T_pad, B, 4H) bf16, backward slab pre-reversed in time.
    whh_f/whh_b: (H, 4H) bf16.
    Returns (out_f, out_b): (T_pad, B, H) f32, out_b in reversed-time order.
    """
    T_pad, B, G = gx_f.shape
    H = hidden_size
    n_chunks = T_pad // chunk

    flops = int(2 * 2 * T_pad * B * H * G)        # recurrent matmuls, both dirs
    trans = int(2 * T_pad * 5 * B * H)            # 3 sigmoid + 2 tanh per step
    bytes_acc = int(2 * T_pad * B * G * 2 + 2 * T_pad * B * H * 4 + 2 * H * G * 2)

    # Explicit scoped-VMEM budget from the (double-buffered) block sizes with
    # headroom; capped at the v7x 64 MiB/TC physical ceiling.
    gx_blk = chunk * B * G * 2                    # bf16
    out_blk = chunk * B * H * 4                   # f32
    whh_blk = H * G * 2                           # bf16
    vmem_est = 2 * (2 * gx_blk + 2 * out_blk + 2 * whh_blk) + 4 * B * H * 4
    vmem_limit = int(min(64 * 1024 * 1024,
                         max(int(1.5 * vmem_est), 16 * 1024 * 1024)))

    out_f, out_b = pl.pallas_call(
        _bilstm_recurrence_kernel,
        out_shape=(jax.ShapeDtypeStruct((T_pad, B, H), jnp.float32),
                   jax.ShapeDtypeStruct((T_pad, B, H), jnp.float32)),
        grid_spec=pltpu.PrefetchScalarGridSpec(
            num_scalar_prefetch=0,
            grid=(n_chunks,),
            in_specs=[
                pl.BlockSpec((chunk, B, G), lambda c: (c, 0, 0)),
                pl.BlockSpec((chunk, B, G), lambda c: (c, 0, 0)),
                pl.BlockSpec((H, G), lambda c: (0, 0)),
                pl.BlockSpec((H, G), lambda c: (0, 0)),
            ],
            out_specs=[
                pl.BlockSpec((chunk, B, H), lambda c: (c, 0, 0)),
                pl.BlockSpec((chunk, B, H), lambda c: (c, 0, 0)),
            ],
            scratch_shapes=[pltpu.VMEM((B, H), jnp.float32) for _ in range(4)],
        ),
        compiler_params=pltpu.CompilerParams(
            dimension_semantics=("arbitrary",),   # carries persist across chunks
            vmem_limit_bytes=vmem_limit),
        cost_estimate=pl.CostEstimate(
            flops=flops, transcendentals=trans, bytes_accessed=bytes_acc),
    )(gx_f, gx_b, whh_f, whh_b)
    return out_f, out_b


# ----------------------------- Model glue -----------------------------

def init_params(key, input_size, hidden_size, num_layers):
    """PyTorch-style uniform(-1/sqrt(H), 1/sqrt(H)) init, f32."""
    k = 1.0 / float(hidden_size) ** 0.5
    params = {}
    for layer in range(num_layers):
        in_dim = input_size if layer == 0 else 2 * hidden_size
        wihs, whhs, bs = [], [], []
        for _ in range(2):  # 0 = forward, 1 = backward
            key, k1, k2, k3, k4 = jax.random.split(key, 5)
            wih = jax.random.uniform(k1, (4 * hidden_size, in_dim),
                                     minval=-k, maxval=k, dtype=jnp.float32)
            whh = jax.random.uniform(k2, (4 * hidden_size, hidden_size),
                                     minval=-k, maxval=k, dtype=jnp.float32)
            bih = jax.random.uniform(k3, (4 * hidden_size,),
                                     minval=-k, maxval=k, dtype=jnp.float32)
            bhh = jax.random.uniform(k4, (4 * hidden_size,),
                                     minval=-k, maxval=k, dtype=jnp.float32)
            wihs.append(wih.T)               # (in_dim, 4H)
            whhs.append(whh.T)               # (H, 4H)
            bs.append(bih + bhh)             # (4H,)
        params[layer] = {'wih': jnp.stack(wihs), 'whh': jnp.stack(whhs),
                         'b': jnp.stack(bs)}
    key, k5, k6 = jax.random.split(key, 3)
    kf = 1.0 / float(2 * hidden_size) ** 0.5
    w_fc = jax.random.uniform(k5, (1, 2 * hidden_size),
                              minval=-kf, maxval=kf, dtype=jnp.float32)
    b_fc = jax.random.uniform(k6, (1,), minval=-kf, maxval=kf, dtype=jnp.float32)
    params['fc'] = (w_fc.T, b_fc)            # (2H, 1), (1,)
    return params


def bilstm_forward(x, params, num_layers, hidden_size):
    """x: (B, T, D) batch_first -> (B, 1) sigmoid probabilities (eval mode)."""
    B, T, _ = x.shape
    H = hidden_size
    chunk = min(_CHUNK_T, _round_up(T, 2))
    T_pad = _round_up(T, chunk)
    pad = T_pad - T

    x_tbd = jnp.transpose(x, (1, 0, 2)).astype(jnp.float32)   # (T, B, D)

    out_f = out_b = None
    for layer in range(num_layers):
        p = params[layer]
        wih, whh, bias = p['wih'], p['whh'], p['b']
        if layer == 0:
            # Input projection for both directions: big MXU-friendly XLA
            # matmuls, hoisted off the serial recurrence.
            gx_f = jnp.einsum('tbd,dg->tbg', x_tbd, wih[0]) + bias[0]
            gx_b = jnp.einsum('tbd,dg->tbg', x_tbd[::-1], wih[1]) + bias[1]
        else:
            # No (T,B,2H) concat: split W_ih rows across the direction halves.
            fwd = out_f[:T]                 # time order
            bwd = out_b[:T]                 # reversed-time order
            gx_f = (jnp.einsum('tbh,hg->tbg', fwd, wih[0][:H])
                    + jnp.einsum('tbh,hg->tbg', bwd[::-1], wih[0][H:])
                    + bias[0])
            gx_b = (jnp.einsum('tbh,hg->tbg', fwd[::-1], wih[1][:H])
                    + jnp.einsum('tbh,hg->tbg', bwd, wih[1][H:])
                    + bias[1])
        if pad:
            # Padded trailing steps compute garbage that never feeds a real
            # output (they come after all real steps in both slabs).
            gx_f = jnp.pad(gx_f, ((0, pad), (0, 0), (0, 0)))
            gx_b = jnp.pad(gx_b, ((0, pad), (0, 0), (0, 0)))

        out_f, out_b = _bilstm_recurrence(
            gx_f.astype(jnp.bfloat16), gx_b.astype(jnp.bfloat16),
            whh[0].astype(jnp.bfloat16), whh[1].astype(jnp.bfloat16),
            H, chunk)
        # TODO(synk): nn.LSTM inter-layer dropout and nn.Dropout are train-mode
        # only; eval forward semantics (no dropout) are implemented here.

    # out[:, -1, :] == [h_fwd(T-1) | h_bwd(T-1)]; the backward slab is stored
    # in reversed-time order, so h_bwd(T-1) is out_b[0].  (B, 2H) slice only.
    last = jnp.concatenate([out_f[T - 1], out_b[0]], axis=-1)
    w_fc, b_fc = params['fc']
    return jax.nn.sigmoid(last @ w_fc + b_fc)


# ----------------------------- pure-JAX reference -----------------------------

def _lstm_direction_ref(x_tbd, wih, whh, bias, reverse):
    T, B, _ = x_tbd.shape
    H = whh.shape[0]
    xs = x_tbd[::-1] if reverse else x_tbd

    def step(carry, x_t):
        h_prev, c_prev = carry
        gates = x_t @ wih + h_prev @ whh + bias
        i = jax.nn.sigmoid(gates[:, 0 * H:1 * H])
        f = jax.nn.sigmoid(gates[:, 1 * H:2 * H])
        g = jnp.tanh(gates[:, 2 * H:3 * H])
        o = jax.nn.sigmoid(gates[:, 3 * H:4 * H])
        c = f * c_prev + i * g
        h = o * jnp.tanh(c)
        return (h, c), h

    init = (jnp.zeros((B, H), jnp.float32), jnp.zeros((B, H), jnp.float32))
    _, ys = jax.lax.scan(step, init, xs)
    return ys[::-1] if reverse else ys


def bilstm_forward_ref(x, params, num_layers):
    h = jnp.transpose(x, (1, 0, 2)).astype(jnp.float32)
    for layer in range(num_layers):
        p = params[layer]
        fwd = _lstm_direction_ref(h, p['wih'][0], p['whh'][0], p['b'][0], False)
        bwd = _lstm_direction_ref(h, p['wih'][1], p['whh'][1], p['b'][1], True)
        h = jnp.concatenate([fwd, bwd], axis=-1)
    last = h[-1]
    w_fc, b_fc = params['fc']
    return jax.nn.sigmoid(last @ w_fc + b_fc)


# ----------------------------- main -----------------------------

if __name__ == "__main__":
    B, T, D, H, L = 2, 8, 16, 32, 2
    key = jax.random.PRNGKey(0)
    kx, kp = jax.random.split(key)
    x = jax.random.normal(kx, (B, T, D), dtype=jnp.float32)
    params = init_params(kp, D, H, L)

    out = jax.block_until_ready(bilstm_forward(x, params, L, H))
    assert out.shape == (B, 1), out.shape

    ref = jax.block_until_ready(bilstm_forward_ref(x, params, L))
    # Kernel uses bf16 MXU operands (f32 accumulation / carries) -> loosened
    # tolerance vs. the pure-f32 reference.
    assert jnp.allclose(out, ref, atol=2e-2, rtol=2e-2), (out, ref)

    print("KERNEL_OK")
</pallas_src>

<mosaic_0001>
module attributes {stable_mosaic.version = 11 : i64} {
  func.func @_bilstm_recurrence_kernel(%arg0: i32, %arg1: memref<8x2x128xbf16, #tpu.memory_space<vmem>>, %arg2: memref<8x2x128xbf16, #tpu.memory_space<vmem>>, %arg3: memref<32x128xbf16, #tpu.memory_space<vmem>>, %arg4: memref<32x128xbf16, #tpu.memory_space<vmem>>, %arg5: memref<8x2x32xf32, #tpu.memory_space<vmem>>, %arg6: memref<8x2x32xf32, #tpu.memory_space<vmem>>, %arg7: memref<2x32xf32, #tpu.memory_space<vmem>>, %arg8: memref<2x32xf32, #tpu.memory_space<vmem>>, %arg9: memref<2x32xf32, #tpu.memory_space<vmem>>, %arg10: memref<2x32xf32, #tpu.memory_space<vmem>>) attributes {dimension_semantics = [#tpu.dimension_semantics<arbitrary>], iteration_bounds = array<i64: 1>, scalar_prefetch = 0 : i64, scratch_operands = 4 : i64, tpu.core_type = #tpu.core_type<tc>, window_params = [{transform_indices = @transform_0, window_bounds = array<i64: 8, 2, 128>}, {transform_indices = @transform_1, window_bounds = array<i64: 8, 2, 128>}, {pipeline_mode = #tpu.pipeline_mode<synchronous>, transform_indices = @transform_2, window_bounds = array<i64: 32, 128>}, {pipeline_mode = #tpu.pipeline_mode<synchronous>, transform_indices = @transform_3, window_bounds = array<i64: 32, 128>}, {transform_indices = @transform_4, window_bounds = array<i64: 8, 2, 32>}, {transform_indices = @transform_5, window_bounds = array<i64: 8, 2, 32>}]} {
    %c0_i32 = arith.constant 0 : i32
    %0 = arith.cmpi eq, %arg0, %c0_i32 : i32
    %1 = arith.extui %0 : i1 to i32
    %c0_i32_0 = arith.constant 0 : i32
    %2 = arith.cmpi ne, %1, %c0_i32_0 : i32
    scf.if %2 {
      %cst = arith.constant 0.000000e+00 : f32
      %6 = vector.broadcast %cst : f32 to vector<2x32xf32>
      %c0_6 = arith.constant 0 : index
      %c0_7 = arith.constant 0 : index
      %7 = vector.load %arg7[%c0_6, %c0_7] : memref<2x32xf32, #tpu.memory_space<vmem>>, vector<2x32xf32>
      tpu.vector_store %arg7[%c0_6, %c0_7], %6 {strides = array<i32>} : memref<2x32xf32, #tpu.memory_space<vmem>>, vector<2x32xf32>,
      %cst_8 = arith.constant 0.000000e+00 : f32
      %8 = vector.broadcast %cst_8 : f32 to vector<2x32xf32>
      %c0_9 = arith.constant 0 : index
      %c0_10 = arith.constant 0 : index
      %9 = vector.load %arg8[%c0_9, %c0_10] : memref<2x32xf32, #tpu.memory_space<vmem>>, vector<2x32xf32>
      tpu.vector_store %arg8[%c0_9, %c0_10], %8 {strides = array<i32>} : memref<2x32xf32, #tpu.memory_space<vmem>>, vector<2x32xf32>,
      %cst_11 = arith.constant 0.000000e+00 : f32
      %10 = vector.broadcast %cst_11 : f32 to vector<2x32xf32>
      %c0_12 = arith.constant 0 : index
      %c0_13 = arith.constant 0 : index
      %11 = vector.load %arg9[%c0_12, %c0_13] : memref<2x32xf32, #tpu.memory_space<vmem>>, vector<2x32xf32>
      tpu.vector_store %arg9[%c0_12, %c0_13], %10 {strides = array<i32>} : memref<2x32xf32, #tpu.memory_space<vmem>>, vector<2x32xf32>,
      %cst_14 = arith.constant 0.000000e+00 : f32
      %12 = vector.broadcast %cst_14 : f32 to vector<2x32xf32>
      %c0_15 = arith.constant 0 : index
      %c0_16 = arith.constant 0 : index
      %13 = vector.load %arg10[%c0_15, %c0_16] : memref<2x32xf32, #tpu.memory_space<vmem>>, vector<2x32xf32>
      tpu.vector_store %arg10[%c0_15, %c0_16], %12 {strides = array<i32>} : memref<2x32xf32, #tpu.memory_space<vmem>>, vector<2x32xf32>,
    } else {
    }
    %c0 = arith.constant 0 : index
    %c0_1 = arith.constant 0 : index
    %3 = vector.load %arg3[%c0, %c0_1] : memref<32x128xbf16, #tpu.memory_space<vmem>>, vector<32x128xbf16>
    %c0_2 = arith.constant 0 : index
    %c0_3 = arith.constant 0 : index
    %4 = vector.load %arg4[%c0_2, %c0_3] : memref<32x128xbf16, #tpu.memory_space<vmem>>, vector<32x128xbf16>
    %c0_i32_4 = arith.constant 0 : i32
    %c4_i32 = arith.constant 4 : i32
    %5 = arith.addi %c0_i32_4, %c4_i32 : i32
    %c1_i32 = arith.constant 1 : i32
    scf.for %arg11 = %c0_i32_4 to %5 step %c1_i32  : i32 {
      %c1_i32_6 = arith.constant 1 : i32
      %6 = arith.muli %arg11, %c1_i32_6 : i32
      %c0_i32_7 = arith.constant 0 : i32
      %7 = arith.addi %c0_i32_7, %6 : i32
      %c2_i32 = arith.constant 2 : i32
      %8 = arith.muli %7, %c2_i32 : i32
      %9 = tpu.assume_multiple %8, 2 : i32
      %10 = arith.index_cast %9 : i32 to index
      %c0_8 = arith.constant 0 : index
      %c0_9 = arith.constant 0 : index
      %11 = vector.load %arg1[%10, %c0_8, %c0_9] : memref<8x2x128xbf16, #tpu.memory_space<vmem>>, vector<1x2x128xbf16>
      %12 = vector.shape_cast %11 : vector<1x2x128xbf16> to vector<2x128xbf16>
      %13 = arith.extf %12 : vector<2x128xbf16> to vector<2x128xf32>
      %c0_10 = arith.constant 0 : index
      %c0_11 = arith.constant 0 : index
      %14 = vector.load %arg7[%c0_10, %c0_11] : memref<2x32xf32, #tpu.memory_space<vmem>>, vector<2x32xf32>
      %15 = arith.truncf %14 : vector<2x32xf32> to vector<2x32xbf16>
      %cst = arith.constant dense<0.000000e+00> : vector<2x128xf32>
      %16 = tpu.matmul %15, %3, %cst {dimension_numbers = #tpu.dot_dimension_numbers<[1], [0], [0], [1], [0, 0, 1, 1], [], []>} : vector<2x32xbf16>, vector<32x128xbf16>, vector<2x128xf32> -> vector<2x128xf32>
      %17 = arith.addf %13, %16 : vector<2x128xf32>
      %18 = arith.index_cast %9 : i32 to index
      %c0_12 = arith.constant 0 : index
      %c0_13 = arith.constant 0 : index
      %19 = vector.load %arg2[%18, %c0_12, %c0_13] : memref<8x2x128xbf16, #tpu.memory_space<vmem>>, vector<1x2x128xbf16>
      %20 = vector.shape_cast %19 : vector<1x2x128xbf16> to vector<2x128xbf16>
      %21 = arith.extf %20 : vector<2x128xbf16> to vector<2x128xf32>
      %c0_14 = arith.constant 0 : index
      %c0_15 = arith.constant 0 : index
      %22 = vector.load %arg9[%c0_14, %c0_15] : memref<2x32xf32, #tpu.memory_space<vmem>>, vector<2x32xf32>
      %23 = arith.truncf %22 : vector<2x32xf32> to vector<2x32xbf16>
      %cst_16 = arith.constant dense<0.000000e+00> : vector<2x128xf32>
      %24 = tpu.matmul %23, %4, %cst_16 {dimension_numbers = #tpu.dot_dimension_numbers<[1], [0], [0], [1], [0, 0, 1, 1], [], []>} : vector<2x32xbf16>, vector<32x128xbf16>, vector<2x128xf32> -> vector<2x128xf32>
      %25 = arith.addf %21, %24 : vector<2x128xf32>
      %c0_17 = arith.constant 0 : index
      %c0_18 = arith.constant 0 : index
      %26 = vector.load %arg8[%c0_17, %c0_18] : memref<2x32xf32, #tpu.memory_space<vmem>>, vector<2x32xf32>
      %27 = vector.extract_strided_slice %17 {offsets = [0, 0], sizes = [2, 32], strides = [1, 1]} : vector<2x128xf32> to vector<2x32xf32>
      %28 = arith.negf %27 : vector<2x32xf32>
      %29 = math.exp %28 : vector<2x32xf32>
      %cst_19 = arith.constant 1.000000e+00 : f32
      %30 = vector.broadcast %cst_19 : f32 to vector<2x32xf32>
      %31 = arith.addf %30, %29 : vector<2x32xf32>
      %32 = arith.divf %30, %31 : vector<2x32xf32>
      %33 = vector.extract_strided_slice %17 {offsets = [0, 32], sizes = [2, 32], strides = [1, 1]} : vector<2x128xf32> to vector<2x32xf32>
      %34 = arith.negf %33 : vector<2x32xf32>
      %35 = math.exp %34 : vector<2x32xf32>
      %cst_20 = arith.constant 1.000000e+00 : f32
      %36 = vector.broadcast %cst_20 : f32 to vector<2x32xf32>
      %37 = arith.addf %36, %35 : vector<2x32xf32>
      %38 = arith.divf %36, %37 : vector<2x32xf32>
      %39 = vector.extract_strided_slice %17 {offsets = [0, 64], sizes = [2, 32], strides = [1, 1]} : vector<2x128xf32> to vector<2x32xf32>
      %40 = math.tanh %39 : vector<2x32xf32>
      %41 = vector.extract_strided_slice %17 {offsets = [0, 96], sizes = [2, 32], strides = [1, 1]} : vector<2x128xf32> to vector<2x32xf32>
      %42 = arith.negf %41 : vector<2x32xf32>
      %43 = math.exp %42 : vector<2x32xf32>
      %cst_21 = arith.constant 1.000000e+00 : f32
      %44 = vector.broadcast %cst_21 : f32 to vector<2x32xf32>
      %45 = arith.addf %44, %43 : vector<2x32xf32>
      %46 = arith.divf %44, %45 : vector<2x32xf32>
      %47 = arith.mulf %38, %26 : vector<2x32xf32>
      %48 = arith.mulf %32, %40 : vector<2x32xf32>
      %49 = arith.addf %47, %48 : vector<2x32xf32>
      %50 = math.tanh %49 : vector<2x32xf32>
      %51 = arith.mulf %46, %50 : vector<2x32xf32>
      %c0_22 = arith.constant 0 : index
      %c0_23 = arith.constant 0 : index
      %52 = vector.load %arg10[%c0_22, %c0_23] : memref<2x32xf32, #tpu.memory_space<vmem>>, vector<2x32xf32>
      %53 = vector.extract_strided_slice %25 {offsets = [0, 0], sizes = [2, 32], strides = [1, 1]} : vector<2x128xf32> to vector<2x32xf32>
      %54 = arith.negf %53 : vector<2x32xf32>
      %55 = math.exp %54 : vector<2x32xf32>
      %cst_24 = arith.constant 1.000000e+00 : f32
      %56 = vector.broadcast %cst_24 : f32 to vector<2x32xf32>
      %57 = arith.addf %56, %55 : vector<2x32xf32>
      %58 = arith.divf %56, %57 : vector<2x32xf32>
      %59 = vector.extract_strided_slice %25 {offsets = [0, 32], sizes = [2, 32], strides = [1, 1]} : vector<2x128xf32> to vector<2x32xf32>
      %60 = arith.negf %59 : vector<2x32xf32>
      %61 = math.exp %60 : vector<2x32xf32>
      %cst_25 = arith.constant 1.000000e+00 : f32
      %62 = vector.broadcast %cst_25 : f32 to vector<2x32xf32>
      %63 = arith.addf %62, %61 : vector<2x32xf32>
      %64 = arith.divf %62, %63 : vector<2x32xf32>
      %65 = vector.extract_strided_slice %25 {offsets = [0, 64], sizes = [2, 32], strides = [1, 1]} : vector<2x128xf32> to vector<2x32xf32>
      %66 = math.tanh %65 : vector<2x32xf32>
      %67 = vector.extract_strided_slice %25 {offsets = [0, 96], sizes = [2, 32], strides = [1, 1]} : vector<2x128xf32> to vector<2x32xf32>
      %68 = arith.negf %67 : vector<2x32xf32>
      %69 = math.exp %68 : vector<2x32xf32>
      %cst_26 = arith.constant 1.000000e+00 : f32
      %70 = vector.broadcast %cst_26 : f32 to vector<2x32xf32>
      %71 = arith.addf %70, %69 : vector<2x32xf32>
      %72 = arith.divf %70, %71 : vector<2x32xf32>
      %73 = arith.mulf %64, %52 : vector<2x32xf32>
      %74 = arith.mulf %58, %66 : vector<2x32xf32>
      %75 = arith.addf %73, %74 : vector<2x32xf32>
      %76 = math.tanh %75 : vector<2x32xf32>
      %77 = arith.mulf %72, %76 : vector<2x32xf32>
      %c0_27 = arith.constant 0 : index
      %c0_28 = arith.constant 0 : index
      %78 = vector.load %arg7[%c0_27, %c0_28] : memref<2x32xf32, #tpu.memory_space<vmem>>, vector<2x32xf32>
      tpu.vector_store %arg7[%c0_27, %c0_28], %51 {strides = array<i32>} : memref<2x32xf32, #tpu.memory_space<vmem>>, vector<2x32xf32>,
      %c0_29 = arith.constant 0 : index
      %c0_30 = arith.constant 0 : index
      %79 = vector.load %arg8[%c0_29, %c0_30] : memref<2x32xf32, #tpu.memory_space<vmem>>, vector<2x32xf32>
      tpu.vector_store %arg8[%c0_29, %c0_30], %49 {strides = array<i32>} : memref<2x32xf32, #tpu.memory_space<vmem>>, vector<2x32xf32>,
      %c0_31 = arith.constant 0 : index
      %c0_32 = arith.constant 0 : index
      %80 = vector.load %arg9[%c0_31, %c0_32] : memref<2x32xf32, #tpu.memory_space<vmem>>, vector<2x32xf32>
      tpu.vector_store %arg9[%c0_31, %c0_32], %77 {strides = array<i32>} : memref<2x32xf32, #tpu.memory_space<vmem>>, vector<2x32xf32>,
      %c0_33 = arith.constant 0 : index
      %c0_34 = arith.constant 0 : index
      %81 = vector.load %arg10[%c0_33, %c0_34] : memref<2x32xf32, #tpu.memory_space<vmem>>, vector<2x32xf32>
      tpu.vector_store %arg10[%c0_33, %c0_34], %75 {strides = array<i32>} : memref<2x32xf32, #tpu.memory_space<vmem>>, vector<2x32xf32>,
      %82 = vector.shape_cast %51 : vector<2x32xf32> to vector<1x2x32xf32>
      %83 = arith.index_cast %9 : i32 to index
      %c0_35 = arith.constant 0 : index
      %c0_36 = arith.constant 0 : index
      %84 = vector.load %arg5[%83, %c0_35, %c0_36] : memref<8x2x32xf32, #tpu.memory_space<vmem>>, vector<1x2x32xf32>
      tpu.vector_store %arg5[%83, %c0_35, %c0_36], %82 {strides = array<i32>} : memref<8x2x32xf32, #tpu.memory_space<vmem>>, vector<1x2x32xf32>,
      %85 = vector.shape_cast %77 : vector<2x32xf32> to vector<1x2x32xf32>
      %86 = arith.index_cast %9 : i32 to index
      %c0_37 = arith.constant 0 : index
      %c0_38 = arith.constant 0 : index
      %87 = vector.load %arg6[%86, %c0_37, %c0_38] : memref<8x2x32xf32, #tpu.memory_space<vmem>>, vector<1x2x32xf32>
      tpu.vector_store %arg6[%86, %c0_37, %c0_38], %85 {strides = array<i32>} : memref<8x2x32xf32, #tpu.memory_space<vmem>>, vector<1x2x32xf32>,
      %c1_i32_39 = arith.constant 1 : i32
      %88 = arith.addi %9, %c1_i32_39 : i32
      %89 = arith.index_cast %88 : i32 to index
      %c0_40 = arith.constant 0 : index
      %c0_41 = arith.constant 0 : index
      %90 = vector.load %arg1[%89, %c0_40, %c0_41] : memref<8x2x128xbf16, #tpu.memory_space<vmem>>, vector<1x2x128xbf16>
      %91 = vector.shape_cast %90 : vector<1x2x128xbf16> to vector<2x128xbf16>
      %92 = arith.extf %91 : vector<2x128xbf16> to vector<2x128xf32>
      %c0_42 = arith.constant 0 : index
      %c0_43 = arith.constant 0 : index
      %93 = vector.load %arg7[%c0_42, %c0_43] : memref<2x32xf32, #tpu.memory_space<vmem>>, vector<2x32xf32>
      %94 = arith.truncf %93 : vector<2x32xf32> to vector<2x32xbf16>
      %cst_44 = arith.constant dense<0.000000e+00> : vector<2x128xf32>
      %95 = tpu.matmul %94, %3, %cst_44 {dimension_numbers = #tpu.dot_dimension_numbers<[1], [0], [0], [1], [0, 0, 1, 1], [], []>} : vector<2x32xbf16>, vector<32x128xbf16>, vector<2x128xf32> -> vector<2x128xf32>
      %96 = arith.addf %92, %95 : vector<2x128xf32>
      %97 = arith.index_cast %88 : i32 to index
      %c0_45 = arith.constant 0 : index
      %c0_46 = arith.constant 0 : index
      %98 = vector.load %arg2[%97, %c0_45, %c0_46] : memref<8x2x128xbf16, #tpu.memory_space<vmem>>, vector<1x2x128xbf16>
      %99 = vector.shape_cast %98 : vector<1x2x128xbf16> to vector<2x128xbf16>
      %100 = arith.extf %99 : vector<2x128xbf16> to vector<2x128xf32>
      %c0_47 = arith.constant 0 : index
      %c0_48 = arith.constant 0 : index
      %101 = vector.load %arg9[%c0_47, %c0_48] : memref<2x32xf32, #tpu.memory_space<vmem>>, vector<2x32xf32>
      %102 = arith.truncf %101 : vector<2x32xf32> to vector<2x32xbf16>
      %cst_49 = arith.constant dense<0.000000e+00> : vector<2x128xf32>
      %103 = tpu.matmul %102, %4, %cst_49 {dimension_numbers = #tpu.dot_dimension_numbers<[1], [0], [0], [1], [0, 0, 1, 1], [], []>} : vector<2x32xbf16>, vector<32x128xbf16>, vector<2x128xf32> -> vector<2x128xf32>
      %104 = arith.addf %100, %103 : vector<2x128xf32>
      %c0_50 = arith.constant 0 : index
      %c0_51 = arith.constant 0 : index
      %105 = vector.load %arg8[%c0_50, %c0_51] : memref<2x32xf32, #tpu.memory_space<vmem>>, vector<2x32xf32>
      %106 = vector.extract_strided_slice %96 {offsets = [0, 0], sizes = [2, 32], strides = [1, 1]} : vector<2x128xf32> to vector<2x32xf32>
      %107 = arith.negf %106 : vector<2x32xf32>
      %108 = math.exp %107 : vector<2x32xf32>
      %cst_52 = arith.constant 1.000000e+00 : f32
      %109 = vector.broadcast %cst_52 : f32 to vector<2x32xf32>
      %110 = arith.addf %109, %108 : vector<2x32xf32>
      %111 = arith.divf %109, %110 : vector<2x32xf32>
      %112 = vector.extract_strided_slice %96 {offsets = [0, 32], sizes = [2, 32], strides = [1, 1]} : vector<2x128xf32> to vector<2x32xf32>
      %113 = arith.negf %112 : vector<2x32xf32>
      %114 = math.exp %113 : vector<2x32xf32>
      %cst_53 = arith.constant 1.000000e+00 : f32
      %115 = vector.broadcast %cst_53 : f32 to vector<2x32xf32>
      %116 = arith.addf %115, %114 : vector<2x32xf32>
      %117 = arith.divf %115, %116 : vector<2x32xf32>
      %118 = vector.extract_strided_slice %96 {offsets = [0, 64], sizes = [2, 32], strides = [1, 1]} : vector<2x128xf32> to vector<2x32xf32>
      %119 = math.tanh %118 : vector<2x32xf32>
      %120 = vector.extract_strided_slice %96 {offsets = [0, 96], sizes = [2, 32], strides = [1, 1]} : vector<2x128xf32> to vector<2x32xf32>
      %121 = arith.negf %120 : vector<2x32xf32>
      %122 = math.exp %121 : vector<2x32xf32>
      %cst_54 = arith.constant 1.000000e+00 : f32
      %123 = vector.broadcast %cst_54 : f32 to vector<2x32xf32>
      %124 = arith.addf %123, %122 : vector<2x32xf32>
      %125 = arith.divf %123, %124 : vector<2x32xf32>
      %126 = arith.mulf %117, %105 : vector<2x32xf32>
      %127 = arith.mulf %111, %119 : vector<2x32xf32>
      %128 = arith.addf %126, %127 : vector<2x32xf32>
      %129 = math.tanh %128 : vector<2x32xf32>
      %130 = arith.mulf %125, %129 : vector<2x32xf32>
      %c0_55 = arith.constant 0 : index
      %c0_56 = arith.constant 0 : index
      %131 = vector.load %arg10[%c0_55, %c0_56] : memref<2x32xf32, #tpu.memory_space<vmem>>, vector<2x32xf32>
      %132 = vector.extract_strided_slice %104 {offsets = [0, 0], sizes = [2, 32], strides = [1, 1]} : vector<2x128xf32> to vector<2x32xf32>
      %133 = arith.negf %132 : vector<2x32xf32>
      %134 = math.exp %133 : vector<2x32xf32>
      %cst_57 = arith.constant 1.000000e+00 : f32
      %135 = vector.broadcast %cst_57 : f32 to vector<2x32xf32>
      %136 = arith.addf %135, %134 : vector<2x32xf32>
      %137 = arith.divf %135, %136 : vector<2x32xf32>
      %138 = vector.extract_strided_slice %104 {offsets = [0, 32], sizes = [2, 32], strides = [1, 1]} : vector<2x128xf32> to vector<2x32xf32>
      %139 = arith.negf %138 : vector<2x32xf32>
      %140 = math.exp %139 : vector<2x32xf32>
      %cst_58 = arith.constant 1.000000e+00 : f32
      %141 = vector.broadcast %cst_58 : f32 to vector<2x32xf32>
      %142 = arith.addf %141, %140 : vector<2x32xf32>
      %143 = arith.divf %141, %142 : vector<2x32xf32>
      %144 = vector.extract_strided_slice %104 {offsets = [0, 64], sizes = [2, 32], strides = [1, 1]} : vector<2x128xf32> to vector<2x32xf32>
      %145 = math.tanh %144 : vector<2x32xf32>
      %146 = vector.extract_strided_slice %104 {offsets = [0, 96], sizes = [2, 32], strides = [1, 1]} : vector<2x128xf32> to vector<2x32xf32>
      %147 = arith.negf %146 : vector<2x32xf32>
      %148 = math.exp %147 : vector<2x32xf32>
      %cst_59 = arith.constant 1.000000e+00 : f32
      %149 = vector.broadcast %cst_59 : f32 to vector<2x32xf32>
      %150 = arith.addf %149, %148 : vector<2x32xf32>
      %151 = arith.divf %149, %150 : vector<2x32xf32>
      %152 = arith.mulf %143, %131 : vector<2x32xf32>
      %153 = arith.mulf %137, %145 : vector<2x32xf32>
      %154 = arith.addf %152, %153 : vector<2x32xf32>
      %155 = math.tanh %154 : vector<2x32xf32>
      %156 = arith.mulf %151, %155 : vector<2x32xf32>
      %c0_60 = arith.constant 0 : index
      %c0_61 = arith.constant 0 : index
      %157 = vector.load %arg7[%c0_60, %c0_61] : memref<2x32xf32, #tpu.memory_space<vmem>>, vector<2x32xf32>
      tpu.vector_store %arg7[%c0_60, %c0_61], %130 {strides = array<i32>} : memref<2x32xf32, #tpu.memory_space<vmem>>, vector<2x32xf32>,
      %c0_62 = arith.constant 0 : index
      %c0_63 = arith.constant 0 : index
      %158 = vector.load %arg8[%c0_62, %c0_63] : memref<2x32xf32, #tpu.memory_space<vmem>>, vector<2x32xf32>
      tpu.vector_store %arg8[%c0_62, %c0_63], %128 {strides = array<i32>} : memref<2x32xf32, #tpu.memory_space<vmem>>, vector<2x32xf32>,
      %c0_64 = arith.constant 0 : index
      %c0_65 = arith.constant 0 : index
      %159 = vector.load %arg9[%c0_64, %c0_65] : memref<2x32xf32, #tpu.memory_space<vmem>>, vector<2x32xf32>
      tpu.vector_store %arg9[%c0_64, %c0_65], %156 {strides = array<i32>} : memref<2x32xf32, #tpu.memory_space<vmem>>, vector<2x32xf32>,
      %c0_66 = arith.constant 0 : index
      %c0_67 = arith.constant 0 : index
      %160 = vector.load %arg10[%c0_66, %c0_67] : memref<2x32xf32, #tpu.memory_space<vmem>>, vector<2x32xf32>
      tpu.vector_store %arg10[%c0_66, %c0_67], %154 {strides = array<i32>} : memref<2x32xf32, #tpu.memory_space<vmem>>, vector<2x32xf32>,
      %161 = vector.shape_cast %130 : vector<2x32xf32> to vector<1x2x32xf32>
      %162 = arith.index_cast %88 : i32 to index
      %c0_68 = arith.constant 0 : index
      %c0_69 = arith.constant 0 : index
      %163 = vector.load %arg5[%162, %c0_68, %c0_69] : memref<8x2x32xf32, #tpu.memory_space<vmem>>, vector<1x2x32xf32>
      tpu.vector_store %arg5[%162, %c0_68, %c0_69], %161 {strides = array<i32>} : memref<8x2x32xf32, #tpu.memory_space<vmem>>, vector<1x2x32xf32>,
      %164 = vector.shape_cast %156 : vector<2x32xf32> to vector<1x2x32xf32>
      %165 = arith.index_cast %88 : i32 to index
      %c0_70 = arith.constant 0 : index
      %c0_71 = arith.constant 0 : index
      %166 = vector.load %arg6[%165, %c0_70, %c0_71] : memref<8x2x32xf32, #tpu.memory_space<vmem>>, vector<1x2x32xf32>
      tpu.vector_store %arg6[%165, %c0_70, %c0_71], %164 {strides = array<i32>} : memref<8x2x32xf32, #tpu.memory_space<vmem>>, vector<1x2x32xf32>,
    }
    %c4_i32_5 = arith.constant 4 : i32
    return
  }
  func.func @transform_0(%arg0: i32) -> (i32, i32, i32) {
    %c0_i32 = arith.constant 0 : i32
    %c0_i32_0 = arith.constant 0 : i32
    %c0_i32_1 = arith.constant 0 : i32
    return %arg0, %c0_i32, %c0_i32_0 : i32, i32, i32
  }
  func.func @transform_1(%arg0: i32) -> (i32, i32, i32) {
    %c0_i32 = arith.constant 0 : i32
    %c0_i32_0 = arith.constant 0 : i32
    %c0_i32_1 = arith.constant 0 : i32
    return %arg0, %c0_i32, %c0_i32_0 : i32, i32, i32
  }
  func.func @transform_2(%arg0: i32) -> (i32, i32) {
    %c0_i32 = arith.constant 0 : i32
    %c0_i32_0 = arith.constant 0 : i32
    %c0_i32_1 = arith.constant 0 : i32
    return %c0_i32, %c0_i32_0 : i32, i32
  }
  func.func @transform_3(%arg0: i32) -> (i32, i32) {
    %c0_i32 = arith.constant 0 : i32
    %c0_i32_0 = arith.constant 0 : i32
    %c0_i32_1 = arith.constant 0 : i32
    return %c0_i32, %c0_i32_0 : i32, i32
  }
  func.func @transform_4(%arg0: i32) -> (i32, i32, i32) {
    %c0_i32 = arith.constant 0 : i32
    %c0_i32_0 = arith.constant 0 : i32
    %c0_i32_1 = arith.constant 0 : i32
    return %arg0, %c0_i32, %c0_i32_0 : i32, i32, i32
  }
  func.func @transform_5(%arg0: i32) -> (i32, i32, i32) {
    %c0_i32 = arith.constant 0 : i32
    %c0_i32_0 = arith.constant 0 : i32
    %c0_i32_1 = arith.constant 0 : i32
    return %arg0, %c0_i32, %c0_i32_0 : i32, i32, i32
  }
}

</mosaic_0001>

<llo_original>
// kernel: tpu_custom_call.1
$region0: #{tpu_custom_call.1}
  #allocation0 [shape = 'u32[]', space=smem, size = 0x4, offset = 0x4, fixed_abs, tag = 'smem constant byte address 0x4 - core index']
  #allocation1 [shape = 'u32[72,128]{1,0:T(1,128)}', space=vmem, size = 0x9000, scoped, tag = 'internal scratch']
  #allocation2 [shape = 'f32[2,32]{1,0:T(2,128)}', space=vmem, size = 0x400, scoped, tag = 'scratch operand']
  #allocation3 [shape = 'f32[2,32]{1,0:T(2,128)}', space=vmem, size = 0x400, scoped, tag = 'scratch operand']
  #allocation4 [shape = 'f32[2,32]{1,0:T(2,128)}', space=vmem, size = 0x400, scoped, tag = 'scratch operand']
  #allocation5 [shape = 'f32[2,32]{1,0:T(2,128)}', space=vmem, size = 0x400, scoped, tag = 'scratch operand']
  %s0 = inlined_call_operand.hbm [shape: bf16[8,2,128], index: 0, kind: input, shape index: {}]
  %s1 = inlined_call_operand.hbm [shape: bf16[8,2,128], index: 1, kind: input, shape index: {}]
  %s2 = inlined_call_operand.hbm [shape: bf16[32,128], index: 2, kind: input, shape index: {}]
  %s3 = inlined_call_operand.hbm [shape: bf16[32,128], index: 3, kind: input, shape index: {}]
  %s4 = inlined_call_operand.hbm [shape: f32[8,2,32], index: 4, kind: output, shape index: {0}]
  %s5 = inlined_call_operand.hbm [shape: f32[8,2,32], index: 5, kind: output, shape index: {1}]
  %6 = xla_tuple %s4, %s5
  %s7 = sld [smem:[#allocation0]]
  $region61: #{tpu_custom_call.1} parent=0
    _
  %s9 = ssub.s32 1, %s7
  %s10 = scalar_select 0, %s9, %s7
  $region1: #{tpu_custom_call.1} parent=0
    #allocation6 [shape = 'u8[4096]{0}', space=vmem, size = 0x1000, scoped, tag = 'input window, operand 0, single buffered']
    #allocation7 [shape = 's32[1]{0}', space=sflag, size = 0x4, scoped, tag = 'scoped memory for tpu_custom_call.1']
    #allocation8 [shape = 's32[1]{0}', space=sflag, size = 0x4, scoped, tag = 'scoped memory for tpu_custom_call.1']
    #allocation9 [shape = 'u8[4096]{0}', space=vmem, size = 0x1000, scoped, tag = 'input window, operand 1, single buffered']
    #allocation10 [shape = 's32[1]{0}', space=sflag, size = 0x4, scoped, tag = 'scoped memory for tpu_custom_call.1']
    #allocation11 [shape = 'u8[8192]{0}', space=vmem, size = 0x2000, scoped, tag = 'input window, operand 2, single buffered']
    #allocation12 [shape = 'u8[8192]{0}', space=vmem, size = 0x2000, scoped, tag = 'input window, operand 3, single buffered']
    #allocation13 [shape = 's32[1]{0}', space=sflag, size = 0x4, scoped, tag = 'scoped memory for tpu_custom_call.1']
    #allocation14 [shape = 'u8[8192]{0}', space=vmem, size = 0x2000, scoped, tag = 'output window, operand 0, single buffered']
    #allocation15 [shape = 'u8[8192]{0}', space=vmem, size = 0x2000, scoped, tag = 'output window, operand 1, single buffered']
    #allocation16 [shape = 's32[1]{0}', space=sflag, size = 0x4, scoped, tag = 'scoped memory for tpu_custom_call.1']
    %11 = vsyncpa [#allocation7], 0
    %12 = vsyncpa [#allocation10], 0
    %13 = vsyncpa [#allocation13], 0
    %14 = vsyncpa [#allocation8], 0
    %15 = vsyncpa [#allocation16], 0
    // Predicated region
    $region2: #{tpu_custom_call.1} parent=1 // pred_check
      _
    $region3: #{tpu_custom_call.1} parent=1 // pred_check_branch
      %17 = sbr.rel (0) target = $region5
    $region4: #{tpu_custom_call.1} parent=1 // pred_region
      %19 = vsyncadd [#allocation7], 0
      %s20 = sshll.u32 %s0, 4
      %s21 = int_to_ptr.hbm [resolvable:$true] %s20
      %s22 = sshll.u32 [#allocation6], 4
      %s23 = int_to_ptr.vmem [resolvable:$true] %s22
      %28 = dma.hbm_to_vmem [thread:$0]  %s21, 128, %s23, [#allocation7], 16, 16, 1
    $region5: #{tpu_custom_call.1} parent=1 // pred_fallthru
      _
    // Predicated region
    $region6: #{tpu_custom_call.1} parent=1 // pred_check
      _
    $region7: #{tpu_custom_call.1} parent=1 // pred_check_branch
      %30 = sbr.rel (0) target = $region9
    $region8: #{tpu_custom_call.1} parent=1 // pred_region
      %32 = vsyncadd [#allocation10], 0
      %s33 = sshll.u32 %s1, 4
      %s34 = int_to_ptr.hbm [resolvable:$true] %s33
      %s35 = sshll.u32 [#allocation9], 4
      %s36 = int_to_ptr.vmem [resolvable:$true] %s35
      %41 = dma.hbm_to_vmem [thread:$0]  %s34, 128, %s36, [#allocation10], 16, 16, 1
    $region9: #{tpu_custom_call.1} parent=1 // pred_fallthru
      _
    // Predicated region
    $region10: #{tpu_custom_call.1} parent=1 // pred_check
      _
    $region11: #{tpu_custom_call.1} parent=1 // pred_check_branch
      %43 = sbr.rel (0) target = $region13
    $region12: #{tpu_custom_call.1} parent=1 // pred_region
      %45 = vsyncadd [#allocation10], 0
      %s46 = sshll.u32 %s2, 4
      %s47 = int_to_ptr.hbm [resolvable:$true] %s46
      %s48 = sshll.u32 [#allocation11], 4
      %s49 = int_to_ptr.vmem [resolvable:$true] %s48
      %54 = dma.hbm_to_vmem [thread:$0]  %s47, 256, %s49, [#allocation10], 64, 64, 4
    $region13: #{tpu_custom_call.1} parent=1 // pred_fallthru
      _
    // Predicated region
    $region14: #{tpu_custom_call.1} parent=1 // pred_check
      _
    $region15: #{tpu_custom_call.1} parent=1 // pred_check_branch
      %56 = sbr.rel (0) target = $region17
    $region16: #{tpu_custom_call.1} parent=1 // pred_region
      %58 = vsyncadd [#allocation13], 0
      %s59 = sshll.u32 %s3, 4
      %s60 = int_to_ptr.hbm [resolvable:$true] %s59
      %s61 = sshll.u32 [#allocation12], 4
      %s62 = int_to_ptr.vmem [resolvable:$true] %s61
      %67 = dma.hbm_to_vmem [thread:$0]  %s60, 256, %s62, [#allocation13], 64, 64, 4
    $region17: #{tpu_custom_call.1} parent=1 // pred_fallthru
      _
    // Predicated region
    $region18: #{tpu_custom_call.1} parent=1 // pred_check
      _
    $region19: #{tpu_custom_call.1} parent=1 // pred_check_branch
      %69 = sbr.rel (0) target = $region21
    $region20: #{tpu_custom_call.1} parent=1 // pred_region
      %71 = dma.done [#allocation7], 128
    $region21: #{tpu_custom_call.1} parent=1 // pred_fallthru
      _
    // Predicated region
    $region22: #{tpu_custom_call.1} parent=1 // pred_check
      _
    $region23: #{tpu_custom_call.1} parent=1 // pred_check_branch
      %73 = sbr.rel (0) target = $region25
    $region24: #{tpu_custom_call.1} parent=1 // pred_region
      %75 = dma.done [#allocation10], 128
    $region25: #{tpu_custom_call.1} parent=1 // pred_fallthru
      _
    // Predicated region
    $region26: #{tpu_custom_call.1} parent=1 // pred_check
      _
    $region27: #{tpu_custom_call.1} parent=1 // pred_check_branch
      %77 = sbr.rel (0) target = $region29
    $region28: #{tpu_custom_call.1} parent=1 // pred_region
      %79 = dma.done [#allocation10], 256
    $region29: #{tpu_custom_call.1} parent=1 // pred_fallthru
      _
    // Predicated region
    $region30: #{tpu_custom_call.1} parent=1 // pred_check
      _
    $region31: #{tpu_custom_call.1} parent=1 // pred_check_branch
      %81 = sbr.rel (0) target = $region33
    $region32: #{tpu_custom_call.1} parent=1 // pred_region
      %83 = dma.done [#allocation13], 256
    $region33: #{tpu_custom_call.1} parent=1 // pred_fallthru
      _
    %p85 = scmp.eq.s32.totalorder 0, 0
    // Predicated region
    $region34: #{tpu_custom_call.1} parent=1 // pred_check
      %p86 = pneg %p85
    $region35: #{tpu_custom_call.1} parent=1 // pred_check_branch
      %88 = sbr.rel (%p86) target = $region37
    $region36: #{tpu_custom_call.1} parent=1 // pred_region
      %vm89 = vcmask 254976
      %90 = vst.msk [vmem:[#allocation2] sm:$0x3] %vm89, 0.0
      %91 = vst.msk [vmem:[#allocation3] sm:$0x3] %vm89, 0.0
      %92 = vst.msk [vmem:[#allocation4] sm:$0x3] %vm89, 0.0
      %93 = vst.msk [vmem:[#allocation5] sm:$0x3] %vm89, 0.0
    $region37: #{tpu_custom_call.1} parent=1 // pred_fallthru
      _
    %v94 = vld [vmem:[#allocation11] sm:$0xf]
    %v95 = vld [vmem:[#allocation11 + $0x4] sm:$0xf]
    %v96 = vld [vmem:[#allocation11 + $0x8] sm:$0xf]
    %v97 = vld [vmem:[#allocation11 + $0xc] sm:$0xf]
    %v98 = vld [vmem:[#allocation12] sm:$0xf]
    %v99 = vld [vmem:[#allocation12 + $0x4] sm:$0xf]
    %v100 = vld [vmem:[#allocation12 + $0x8] sm:$0xf]
    %v101 = vld [vmem:[#allocation12 + $0xc] sm:$0xf]
    loop: start=0, step=1, limit=4
    $region38: #{tpu_custom_call.1} parent=1 // loop_pre_header
      _
    $region39: #{tpu_custom_call.1} parent=1 // loop_header
      %s103 = sphi 0, %s107
      %p104 = scmp.ge.s32.totalorder %s103, 4
    $region40: #{tpu_custom_call.1} parent=1 // loop_header_branch
      %106 = sbr.rel (%p104) target = $region44
    $region41: #{tpu_custom_call.1} parent=1 // loop_body
      %s108 = smul.u32 %s103, 2
      %s109 = scalar_lea.vmem [#allocation6], %s108
      %v110 = vld [vmem:[%s109] sm:$0x1]
      %v111 = vunpack.c.l.bf16 %v110
      %v112 = vld [vmem:[#allocation2] sm:$0x3]
      %v113 = vpack.c.bf16 %v112, %v112
      %v118 = vunpack.c.l.b16 %v94
      %v119 = vunpack.c.l.b16 %v95
      %v120 = vunpack.c.l.b16 %v96
      %v121 = vunpack.c.l.b16 %v97
      %v122 = vpack.c.b16 %v119, %v118
      %v123 = vpack.c.b16 %v121, %v120
      %vm126 = vcmask 261120
      %v128 = vsel %vm126, %v113, 0
      %130 = vmatpush.bf16.msra.mxu0 0
      %131 = vmatpush.bf16.msra.mxu0 0
      %132 = vmatpush.bf16.msra.mxu0 0
      %133 = vmatpush.bf16.msra.mxu0 0
      %134 = vmatpush.bf16.msra.mxu0 0
      %135 = vmatpush.bf16.msra.mxu0 0
      %136 = vmatpush.bf16.msra.mxu0 %v123
      %137 = vmatpush.bf16.msra.mxu0 %v122
      %138 = vmatmul.bf16.gmra.mxu0 %v128
      %v139 = vpop.f32.mrf.mxu0
      %v140 = vadd.f32 0.0, %v139
      %v141 = vpop.f32.mrf.mxu0
      %142 = vdwg.mxu0
      %v143 = vadd.f32 %v111, %v140
      %s144 = scalar_lea.vmem [#allocation9], %s108
      %v145 = vld [vmem:[%s144] sm:$0x1]
      %v146 = vunpack.c.l.bf16 %v145
      %v147 = vld [vmem:[#allocation4] sm:$0x3]
      %v148 = vpack.c.bf16 %v147, %v147
      %v153 = vunpack.c.l.b16 %v98
      %v154 = vunpack.c.l.b16 %v99
      %v155 = vunpack.c.l.b16 %v100
      %v156 = vunpack.c.l.b16 %v101
      %v157 = vpack.c.b16 %v154, %v153
      %v158 = vpack.c.b16 %v156, %v155
      %v162 = vsel %vm126, %v148, 0
      %164 = vmatpush.bf16.msra.mxu0 0
      %165 = vmatpush.bf16.msra.mxu0 0
      %166 = vmatpush.bf16.msra.mxu0 0
      %167 = vmatpush.bf16.msra.mxu0 0
      %168 = vmatpush.bf16.msra.mxu0 0
      %169 = vmatpush.bf16.msra.mxu0 0
      %170 = vmatpush.bf16.msra.mxu0 %v158
      %171 = vmatpush.bf16.msra.mxu0 %v157
      %172 = vmatmul.bf16.gmra.mxu0 %v162
      %v173 = vpop.f32.mrf.mxu0
      %v174 = vadd.f32 0.0, %v173
      %v175 = vpop.f32.mrf.mxu0
      %176 = vdwg.mxu0
      %v177 = vadd.f32 %v146, %v174
      %v178 = vld [vmem:[#allocation3] sm:$0x3]
      %v179 = vxor.u32 %v143, 2147483648
      %v180 = vmul.f32 %v179, 1.442695
      %v181 = vpow.pop %v180
      %v182 = vadd.f32 %v181, 1.0
      %v183 = vrcp.pop %v182
      %v184 = vmul.f32 %v182, %v183
      %v185 = vsub.f32 1.0, %v184
      %v186 = vmul.f32 %v183, %v185
      %v187 = vadd.f32 %v183, %v186
      %vm188 = vweird.f32 %v182
      %vm189 = vweird.f32 %v183
      %vm190 = vmor %vm188, %vm189
      %v191 = vsel %vm190, %v183, %v187
      %v192 = vand.u32 2147483647, %v182
      %vm193 = vcmp.eq.f32.partialorder %v192, 8.507059e+37
      %v194 = vand.u32 %v182, 2147483648
      %v195 = vor.u32 1.1754944e-38, %v194
      %v196 = vsel %vm193, %v195, %v191
      %v197 = vmul.f32 1.0, %v196
      %v198 = vtanh.pop %v143
      %200 = vrot.lane.b32.xlu0 %v178, 32
      %v201 = vpop.permute.xlu0 %200
      %v203 = vmul.f32 %v197, %v201
      %205 = vrot.lane.b32.xlu0 %v198, 64
      %v206 = vpop.permute.xlu0 %205
      %v208 = vmul.f32 %v197, %v206
      %210 = vrot.lane.b32.xlu0 %v208, 32
      %v211 = vpop.permute.xlu0 %210
      %v213 = vadd.f32 %v203, %v211
      %v214 = vtanh.pop %v213
      %216 = vrot.lane.b32.xlu0 %v214, 64
      %v217 = vpop.permute.xlu0 %216
      %v219 = vmul.f32 %v197, %v217
      %v220 = vld [vmem:[#allocation5] sm:$0x3]
      %v221 = vxor.u32 %v177, 2147483648
      %v222 = vmul.f32 %v221, 1.442695
      %v223 = vpow.pop %v222
      %v224 = vadd.f32 %v223, 1.0
      %v225 = vrcp.pop %v224
      %v226 = vmul.f32 %v224, %v225
      %v227 = vsub.f32 1.0, %v226
      %v228 = vmul.f32 %v225, %v227
      %v229 = vadd.f32 %v225, %v228
      %vm230 = vweird.f32 %v224
      %vm231 = vweird.f32 %v225
      %vm232 = vmor %vm230, %vm231
      %v233 = vsel %vm232, %v225, %v229
      %v234 = vand.u32 2147483647, %v224
      %vm235 = vcmp.eq.f32.partialorder %v234, 8.507059e+37
      %v236 = vand.u32 %v224, 2147483648
      %v237 = vor.u32 1.1754944e-38, %v236
      %v238 = vsel %vm235, %v237, %v233
      %v239 = vmul.f32 1.0, %v238
      %v240 = vtanh.pop %v177
      %242 = vrot.lane.b32.xlu0 %v220, 32
      %v243 = vpop.permute.xlu0 %242
      %v245 = vmul.f32 %v239, %v243
      %247 = vrot.lane.b32.xlu0 %v240, 64
      %v248 = vpop.permute.xlu0 %247
      %v250 = vmul.f32 %v239, %v248
      %252 = vrot.lane.b32.xlu0 %v250, 32
      %v253 = vpop.permute.xlu0 %252
      %v255 = vadd.f32 %v245, %v253
      %v256 = vtanh.pop %v255
      %258 = vrot.lane.b32.xlu0 %v256, 64
      %v259 = vpop.permute.xlu0 %258
      %v261 = vmul.f32 %v239, %v259
      %263 = vst [vmem:[#allocation1] ss:$4 sm:$0xff] %v219
      %v264 = vld.sshfl [vmem:[#allocation1] sm:$0xff pattern:$0x73625140]
      %265 = vrot.lane.b32.xlu0 %v264, 32
      %v266 = vpop.permute.xlu0 %265
      %vm268 = vcmask 254976
      %269 = vst.msk [vmem:[#allocation2] sm:$0x3] %vm268, %v266
      %271 = vst [vmem:[#allocation1] ss:$4 sm:$0xff] %v213
      %v272 = vld.sshfl [vmem:[#allocation1] sm:$0xff pattern:$0x73625140]
      %273 = vrot.lane.b32.xlu0 %v272, 96
      %v274 = vpop.permute.xlu0 %273
      %276 = vst.msk [vmem:[#allocation3] sm:$0x3] %vm268, %v274
      %278 = vst [vmem:[#allocation1] ss:$4 sm:$0xff] %v261
      %v279 = vld.sshfl [vmem:[#allocation1] sm:$0xff pattern:$0x73625140]
      %280 = vrot.lane.b32.xlu0 %v279, 32
      %v281 = vpop.permute.xlu0 %280
      %283 = vst.msk [vmem:[#allocation4] sm:$0x3] %vm268, %v281
      %285 = vst [vmem:[#allocation1] ss:$4 sm:$0xff] %v255
      %v286 = vld.sshfl [vmem:[#allocation1] sm:$0xff pattern:$0x73625140]
      %287 = vrot.lane.b32.xlu0 %v286, 96
      %v288 = vpop.permute.xlu0 %287
      %290 = vst.msk [vmem:[#allocation5] sm:$0x3] %vm268, %v288
      %291 = vst [vmem:[#allocation1] ss:$4 sm:$0xff] %v219
      %v292 = vld.sshfl [vmem:[#allocation1] sm:$0xff pattern:$0x73625140]
      %293 = vrot.lane.b32.xlu0 %v292, 32
      %v294 = vpop.permute.xlu0 %293
      %s296 = smul.u32 %s108, 2
      %s297 = scalar_lea.vmem [#allocation14], %s296
      %298 = vst.msk [vmem:[%s297] sm:$0x3] %vm268, %v294
      %299 = vst [vmem:[#allocation1] ss:$4 sm:$0xff] %v261
      %v300 = vld.sshfl [vmem:[#allocation1] sm:$0xff pattern:$0x73625140]
      %301 = vrot.lane.b32.xlu0 %v300, 32
      %v302 = vpop.permute.xlu0 %301
      %s304 = scalar_lea.vmem [#allocation15], %s296
      %305 = vst.msk [vmem:[%s304] sm:$0x3] %vm268, %v302
      %s306 = sadd.s32 %s108, 1
      %s307 = scalar_lea.vmem [#allocation6], %s306
      %v308 = vld [vmem:[%s307] sm:$0x1]
      %v309 = vunpack.c.l.bf16 %v308
      %v310 = vld [vmem:[#allocation2] sm:$0x3]
      %v311 = vpack.c.bf16 %v310, %v310
      %v313 = vsel %vm126, %v311, 0
      %315 = vmatpush.bf16.msra.mxu0 0
      %316 = vmatpush.bf16.msra.mxu0 0
      %317 = vmatpush.bf16.msra.mxu0 0
      %318 = vmatpush.bf16.msra.mxu0 0
      %319 = vmatpush.bf16.msra.mxu0 0
      %320 = vmatpush.bf16.msra.mxu0 0
      %321 = vmatpush.bf16.msra.mxu0 %v123
      %322 = vmatpush.bf16.msra.mxu0 %v122
      %323 = vmatmul.bf16.gmra.mxu0 %v313
      %v324 = vpop.f32.mrf.mxu0
      %v325 = vadd.f32 0.0, %v324
      %v326 = vpop.f32.mrf.mxu0
      %327 = vdwg.mxu0
      %v328 = vadd.f32 %v309, %v325
      %s329 = scalar_lea.vmem [#allocation9], %s306
      %v330 = vld [vmem:[%s329] sm:$0x1]
      %v331 = vunpack.c.l.bf16 %v330
      %v332 = vld [vmem:[#allocation4] sm:$0x3]
      %v333 = vpack.c.bf16 %v332, %v332
      %v335 = vsel %vm126, %v333, 0
      %337 = vmatpush.bf16.msra.mxu0 0
      %338 = vmatpush.bf16.msra.mxu0 0
      %339 = vmatpush.bf16.msra.mxu0 0
      %340 = vmatpush.bf16.msra.mxu0 0
      %341 = vmatpush.bf16.msra.mxu0 0
      %342 = vmatpush.bf16.msra.mxu0 0
      %343 = vmatpush.bf16.msra.mxu0 %v158
      %344 = vmatpush.bf16.msra.mxu0 %v157
      %345 = vmatmul.bf16.gmra.mxu0 %v335
      %v346 = vpop.f32.mrf.mxu0
      %v347 = vadd.f32 0.0, %v346
      %v348 = vpop.f32.mrf.mxu0
      %349 = vdwg.mxu0
      %v350 = vadd.f32 %v331, %v347
      %v351 = vld [vmem:[#allocation3] sm:$0x3]
      %v352 = vxor.u32 %v328, 2147483648
      %v353 = vmul.f32 %v352, 1.442695
      %v354 = vpow.pop %v353
      %v355 = vadd.f32 %v354, 1.0
      %v356 = vrcp.pop %v355
      %v357 = vmul.f32 %v355, %v356
      %v358 = vsub.f32 1.0, %v357
      %v359 = vmul.f32 %v356, %v358
      %v360 = vadd.f32 %v356, %v359
      %vm361 = vweird.f32 %v355
      %vm362 = vweird.f32 %v356
      %vm363 = vmor %vm361, %vm362
      %v364 = vsel %vm363, %v356, %v360
      %v365 = vand.u32 2147483647, %v355
      %vm366 = vcmp.eq.f32.partialorder %v365, 8.507059e+37
      %v367 = vand.u32 %v355, 2147483648
      %v368 = vor.u32 1.1754944e-38, %v367
      %v369 = vsel %vm366, %v368, %v364
      %v370 = vmul.f32 1.0, %v369
      %v371 = vtanh.pop %v328
      %373 = vrot.lane.b32.xlu0 %v351, 32
      %v374 = vpop.permute.xlu0 %373
      %v376 = vmul.f32 %v370, %v374
      %378 = vrot.lane.b32.xlu0 %v371, 64
      %v379 = vpop.permute.xlu0 %378
      %v381 = vmul.f32 %v370, %v379
      %383 = vrot.lane.b32.xlu0 %v381, 32
      %v384 = vpop.permute.xlu0 %383
      %v386 = vadd.f32 %v376, %v384
      %v387 = vtanh.pop %v386
      %389 = vrot.lane.b32.xlu0 %v387, 64
      %v390 = vpop.permute.xlu0 %389
      %v392 = vmul.f32 %v370, %v390
      %v393 = vld [vmem:[#allocation5] sm:$0x3]
      %v394 = vxor.u32 %v350, 2147483648
      %v395 = vmul.f32 %v394, 1.442695
      %v396 = vpow.pop %v395
      %v397 = vadd.f32 %v396, 1.0
      %v398 = vrcp.pop %v397
      %v399 = vmul.f32 %v397, %v398
      %v400 = vsub.f32 1.0, %v399
      %v401 = vmul.f32 %v398, %v400
      %v402 = vadd.f32 %v398, %v401
      %vm403 = vweird.f32 %v397
      %vm404 = vweird.f32 %v398
      %vm405 = vmor %vm403, %vm404
      %v406 = vsel %vm405, %v398, %v402
      %v407 = vand.u32 2147483647, %v397
      %vm408 = vcmp.eq.f32.partialorder %v407, 8.507059e+37
      %v409 = vand.u32 %v397, 2147483648
      %v410 = vor.u32 1.1754944e-38, %v409
      %v411 = vsel %vm408, %v410, %v406
      %v412 = vmul.f32 1.0, %v411
      %v413 = vtanh.pop %v350
      %415 = vrot.lane.b32.xlu0 %v393, 32
      %v416 = vpop.permute.xlu0 %415
      %v418 = vmul.f32 %v412, %v416
      %420 = vrot.lane.b32.xlu0 %v413, 64
      %v421 = vpop.permute.xlu0 %420
      %v423 = vmul.f32 %v412, %v421
      %425 = vrot.lane.b32.xlu0 %v423, 32
      %v426 = vpop.permute.xlu0 %425
      %v428 = vadd.f32 %v418, %v426
      %v429 = vtanh.pop %v428
      %431 = vrot.lane.b32.xlu0 %v429, 64
      %v432 = vpop.permute.xlu0 %431
      %v434 = vmul.f32 %v412, %v432
      %436 = vst [vmem:[#allocation1] ss:$4 sm:$0xff] %v392
      %v437 = vld.sshfl [vmem:[#allocation1] sm:$0xff pattern:$0x73625140]
      %438 = vrot.lane.b32.xlu0 %v437, 32
      %v439 = vpop.permute.xlu0 %438
      %441 = vst.msk [vmem:[#allocation2] sm:$0x3] %vm268, %v439
      %443 = vst [vmem:[#allocation1] ss:$4 sm:$0xff] %v386
      %v444 = vld.sshfl [vmem:[#allocation1] sm:$0xff pattern:$0x73625140]
      %445 = vrot.lane.b32.xlu0 %v444, 96
      %v446 = vpop.permute.xlu0 %445
      %448 = vst.msk [vmem:[#allocation3] sm:$0x3] %vm268, %v446
      %450 = vst [vmem:[#allocation1] ss:$4 sm:$0xff] %v434
      %v451 = vld.sshfl [vmem:[#allocation1] sm:$0xff pattern:$0x73625140]
      %452 = vrot.lane.b32.xlu0 %v451, 32
      %v453 = vpop.permute.xlu0 %452
      %455 = vst.msk [vmem:[#allocation4] sm:$0x3] %vm268, %v453
      %457 = vst [vmem:[#allocation1] ss:$4 sm:$0xff] %v428
      %v458 = vld.sshfl [vmem:[#allocation1] sm:$0xff pattern:$0x73625140]
      %459 = vrot.lane.b32.xlu0 %v458, 96
      %v460 = vpop.permute.xlu0 %459
      %462 = vst.msk [vmem:[#allocation5] sm:$0x3] %vm268, %v460
      %463 = vst [vmem:[#allocation1] ss:$4 sm:$0xff] %v392
      %v464 = vld.sshfl [vmem:[#allocation1] sm:$0xff pattern:$0x73625140]
      %465 = vrot.lane.b32.xlu0 %v464, 32
      %v466 = vpop.permute.xlu0 %465
      %s468 = smul.u32 %s306, 2
      %s469 = scalar_lea.vmem [#allocation14], %s468
      %470 = vst.msk [vmem:[%s469] sm:$0x3] %vm268, %v466
      %471 = vst [vmem:[#allocation1] ss:$4 sm:$0xff] %v434
      %v472 = vld.sshfl [vmem:[#allocation1] sm:$0xff pattern:$0x73625140]
      %473 = vrot.lane.b32.xlu0 %v472, 32
      %v474 = vpop.permute.xlu0 %473
      %s476 = scalar_lea.vmem [#allocation15], %s468
      %477 = vst.msk [vmem:[%s476] sm:$0x3] %vm268, %v474
    $region42: #{tpu_custom_call.1} parent=1 // loop_footer
      %s107 = sadd.s32 1, %s103
    $region43: #{tpu_custom_call.1} parent=1 // loop_footer_branch
      %102 = sbr.rel target = $region39
    $region44: #{tpu_custom_call.1} parent=1 // loop_exit
      _
    // Predicated region
    $region45: #{tpu_custom_call.1} parent=1 // pred_check
      _
    $region46: #{tpu_custom_call.1} parent=1 // pred_check_branch
      %479 = sbr.rel (0) target = $region48
    $region47: #{tpu_custom_call.1} parent=1 // pred_region
      %481 = vsyncadd [#allocation8], 0
      %s482 = sshll.u32 [#allocation14], 4
      %s483 = int_to_ptr.vmem [resolvable:$true] %s482
      %s484 = sshll.u32 %s4, 4
      %s485 = int_to_ptr.hbm [resolvable:$true] %s484
      %490 = dma.vmem_to_hbm [thread:$0]  %s483, 256, %s485, [#allocation8], 32, 32, 2
    $region48: #{tpu_custom_call.1} parent=1 // pred_fallthru
      _
    // Predicated region
    $region49: #{tpu_custom_call.1} parent=1 // pred_check
      _
    $region50: #{tpu_custom_call.1} parent=1 // pred_check_branch
      %492 = sbr.rel (0) target = $region52
    $region51: #{tpu_custom_call.1} parent=1 // pred_region
      %494 = vsyncadd [#allocation16], 0
      %s495 = sshll.u32 [#allocation15], 4
      %s496 = int_to_ptr.vmem [resolvable:$true] %s495
      %s497 = sshll.u32 %s5, 4
      %s498 = int_to_ptr.hbm [resolvable:$true] %s497
      %503 = dma.vmem_to_hbm [thread:$0]  %s496, 256, %s498, [#allocation16], 32, 32, 2
    $region52: #{tpu_custom_call.1} parent=1 // pred_fallthru
      _
    // Predicated region
    $region53: #{tpu_custom_call.1} parent=1 // pred_check
      _
    $region54: #{tpu_custom_call.1} parent=1 // pred_check_branch
      %505 = sbr.rel (0) target = $region56
    $region55: #{tpu_custom_call.1} parent=1 // pred_region
      %507 = dma.done [#allocation8], 256
    $region56: #{tpu_custom_call.1} parent=1 // pred_fallthru
      _
    // Predicated region
    $region57: #{tpu_custom_call.1} parent=1 // pred_check
      _
    $region58: #{tpu_custom_call.1} parent=1 // pred_check_branch
      %509 = sbr.rel (0) target = $region60
    $region59: #{tpu_custom_call.1} parent=1 // pred_region
      %511 = dma.done [#allocation16], 256
    $region60: #{tpu_custom_call.1} parent=1 // pred_fallthru
      _
    %512 = vsyncpa [#allocation7], 1
    %513 = vsyncpa [#allocation10], 1
    %514 = vsyncpa [#allocation13], 1
    %515 = vsyncpa [#allocation8], 1
    %516 = vsyncpa [#allocation16], 1

</llo_original>
